<compile_context>
chip_gen: v5e
topology: v5e:2x2
jax: 0.10.0
libtpu: 0.0.40
codegen_flags: <defaults>
</compile_context>

<pallas_src>
import functools

import jax
import jax.numpy as jnp
from jax.experimental import pallas as pl
from jax.experimental.pallas import tpu as pltpu


def _pscn_channel_attention_kernel(
        x_ref, w1a_ref, w2a_ref, w1m_ref, w2m_ref, o_ref,
        sum_sc, max_sc, *, seq_len, tl, inv_l):
    """One (TB, C, TL) slab of x per step; FC + sigmoid on the last L step."""
    l_idx = pl.program_id(1)

    # ---- init running accumulators on the first L step -----------------
    @pl.when(l_idx == 0)
    def _init():
        sum_sc[...] = jnp.zeros_like(sum_sc)
        max_sc[...] = jnp.full_like(max_sc, -jnp.inf)

    x = x_ref[...]                                        # (TB, C, TL)

    # Mask padded lanes of the last L block (static check: only emitted when
    # L is not a multiple of the L tile).
    if seq_len % tl != 0:
        lane = jax.lax.broadcasted_iota(jnp.int32, x.shape, dimension=2)
        valid = (l_idx * tl + lane) < seq_len
        x_sum = jnp.where(valid, x, jnp.zeros((), x.dtype))
        x_max = jnp.where(valid, x, jnp.full((), -jnp.inf, x.dtype))
    else:
        x_sum = x
        x_max = x

    # AdaptiveAvgPool1d(1) / AdaptiveMaxPool1d(1): reduce the lane (L) axis.
    # Sum accumulates in f32 without materializing an f32 copy of the tile.
    sum_sc[...] += jnp.sum(x_sum, axis=-1, dtype=jnp.float32)          # (TB, C)
    max_sc[...] = jnp.maximum(max_sc[...],
                              jnp.max(x_max, axis=-1).astype(jnp.float32))

    # ---- FC heads + sigmoid on the last L step --------------------------
    @pl.when(l_idx == pl.num_programs(1) - 1)
    def _finalize():
        avg = sum_sc[...] * jnp.float32(inv_l)            # (TB, C) f32
        mx = max_sc[...]                                  # (TB, C) f32

        # Conv1d(k=1, no bias) -> ReLU -> Conv1d(k=1, no bias), batched over
        # TB rows.  Contract on the weights' `in` axis (dim 1) -> no transposes.
        # Weights stay in their native dtype; the MXU accumulates in f32.
        dn = (((1,), (1,)), ((), ()))

        def fc(pooled, w1_ref, w2_ref):
            h = jax.lax.dot_general(pooled.astype(w1_ref.dtype), w1_ref[...], dn,
                                    preferred_element_type=jnp.float32)  # (TB, Ch)
            h = jnp.maximum(h, 0.0)
            return jax.lax.dot_general(h.astype(w2_ref.dtype), w2_ref[...], dn,
                                       preferred_element_type=jnp.float32)  # (TB, C)

        y = fc(avg, w1a_ref, w2a_ref) + fc(mx, w1m_ref, w2m_ref)       # (TB, C)
        o_ref[...] = jax.nn.sigmoid(y).astype(o_ref.dtype)


def _pick_vmem_limit():
    """Chip-aware VMEM limit: generous on v5e/v6e (128 MiB), safe on v7x (64 MiB)."""
    try:
        cap = pltpu.get_tpu_info().vmem_capacity_bytes
    except Exception:
        cap = None
    if cap is not None and cap >= (100 << 20):
        return 100 << 20          # v5e / v6e
    return 48 << 20               # v7x or unknown: conservative


def _choose_tiling(B, C, L, x_itemsize, out_itemsize, weight_bytes, vmem_limit):
    """Return (tb, tl) such that the pipelined working set fits vmem_limit."""
    slack = 4 << 20               # Mosaic internal scratch + misc headroom
    avail = max(vmem_limit - weight_bytes - slack, 1 << 20)

    # Cost of one batch row at full L: x double-buffered + out double-buffered
    # + f32 sum/max scratch.
    per_row_full = 2 * C * L * x_itemsize + 2 * C * out_itemsize + 2 * C * 4
    max_rows = avail // per_row_full

    if max_rows >= B:
        return B, L
    if max_rows >= 8:
        return int((max_rows // 8) * 8), L

    # Fewer than 8 rows fit at full L -> split L instead of blowing the budget.
    tb = min(B, 8)
    per_row_fixed = 2 * C * out_itemsize + 2 * C * 4
    rem = max(avail - tb * per_row_fixed, 1 << 18)
    tl_max = rem // (2 * tb * C * x_itemsize)
    tl = max(128, int((tl_max // 128) * 128))
    tl = min(tl, L)
    return tb, tl


def pscn_channel_attention(x, w1a, w2a, w1m, w2m, *, vmem_limit_bytes=None):
    """sigmoid(fc1(avgpool(x)) + fc2(maxpool(x))) -> (B, C, 1)."""
    B, C, L = x.shape
    Ch = w1a.shape[0]
    assert w1a.shape == (Ch, C) and w2a.shape == (C, Ch)
    assert w1m.shape == (Ch, C) and w2m.shape == (C, Ch)

    x_itemsize = jnp.dtype(x.dtype).itemsize
    out_itemsize = x_itemsize
    w_itemsize = jnp.dtype(w1a.dtype).itemsize
    weight_bytes = 4 * C * Ch * w_itemsize          # single-buffered residents

    if vmem_limit_bytes is None:
        vmem_limit_bytes = _pick_vmem_limit()

    tb, tl = _choose_tiling(B, C, L, x_itemsize, out_itemsize,
                            weight_bytes, vmem_limit_bytes)
    grid_b = pl.cdiv(B, tb)
    grid_l = pl.cdiv(L, tl)

    # Resident weights: constant index_map -> single buffer (no dead VMEM).
    weight_spec = functools.partial(
        pl.BlockSpec, index_map=lambda b, l: (0, 0), pipeline_mode=pl.Buffered(1))

    kernel = functools.partial(
        _pscn_channel_attention_kernel,
        seq_len=L, tl=tl, inv_l=1.0 / L)

    flops = 2 * B * C * L + 8 * B * C * Ch + B * C
    bytes_accessed = (B * C * L * x_itemsize
                      + weight_bytes
                      + B * C * out_itemsize)

    out2d = pl.pallas_call(
        kernel,
        out_shape=jax.ShapeDtypeStruct((B, C), x.dtype),
        grid=(grid_b, grid_l),
        in_specs=[
            pl.BlockSpec((tb, C, tl), lambda b, l: (b, 0, l)),   # x slab
            weight_spec((Ch, C)),                                # fc1 conv #1
            weight_spec((C, Ch)),                                # fc1 conv #2
            weight_spec((Ch, C)),                                # fc2 conv #1
            weight_spec((C, Ch)),                                # fc2 conv #2
        ],
        out_specs=pl.BlockSpec((tb, C), lambda b, l: (b, 0)),    # lane-dense out
        scratch_shapes=[
            pltpu.VMEM((tb, C), jnp.float32),   # running sum
            pltpu.VMEM((tb, C), jnp.float32),   # running max
        ],
        compiler_params=pltpu.CompilerParams(
            dimension_semantics=("parallel", "arbitrary"),
            vmem_limit_bytes=vmem_limit_bytes),
        cost_estimate=pl.CostEstimate(
            flops=flops, transcendentals=B * C, bytes_accessed=bytes_accessed),
    )(x, w1a, w2a, w1m, w2m)

    return out2d.reshape(B, C, 1)


def _reference(x, w1a, w2a, w1m, w2m):
    avg = jnp.mean(x, axis=-1, keepdims=True)                    # (B, C, 1)
    mx = jnp.max(x, axis=-1, keepdims=True)                      # (B, C, 1)
    h_a = jnp.maximum(jnp.einsum('hc,bcl->bhl', w1a, avg), 0.0)
    y_a = jnp.einsum('ch,bhl->bcl', w2a, h_a)
    h_m = jnp.maximum(jnp.einsum('hc,bcl->bhl', w1m, mx), 0.0)
    y_m = jnp.einsum('ch,bhl->bcl', w2m, h_m)
    return jax.nn.sigmoid(y_a + y_m)


if __name__ == "__main__":
    B, C, L = 8, 32, 64
    Ch = C // 2

    key = jax.random.PRNGKey(0)
    kx, k1, k2, k3, k4 = jax.random.split(key, 5)

    x = jax.random.normal(kx, (B, C, L), dtype=jnp.float32)

    # deterministic kaiming-uniform-style init (fan_in = in_channels * kernel_size)
    def init_w(k, shape, fan_in):
        bound = (1.0 / fan_in) ** 0.5
        return jax.random.uniform(k, shape, jnp.float32, -bound, bound)

    w1a = init_w(k1, (Ch, C), C)    # fc1 first Conv1d weight  (out=C//2, in=C)
    w2a = init_w(k2, (C, Ch), Ch)   # fc1 second Conv1d weight (out=C,    in=C//2)
    w1m = init_w(k3, (Ch, C), C)    # fc2 first Conv1d weight
    w2m = init_w(k4, (C, Ch), Ch)   # fc2 second Conv1d weight

    out = pscn_channel_attention(x, w1a, w2a, w1m, w2m)
    out = jax.block_until_ready(out)

    ref = _reference(x, w1a, w2a, w1m, w2m)
    assert out.shape == (B, C, 1)
    assert jnp.allclose(out, ref, atol=1e-5, rtol=1e-5)

    print("KERNEL_OK")
</pallas_src>

<mosaic_0001>
module attributes {stable_mosaic.version = 11 : i64} {
  func.func @_pscn_channel_attention_kernel(%arg0: i32, %arg1: i32, %arg2: memref<8x32x64xf32, #tpu.memory_space<vmem>>, %arg3: memref<16x32xf32, #tpu.memory_space<vmem>>, %arg4: memref<32x16xf32, #tpu.memory_space<vmem>>, %arg5: memref<16x32xf32, #tpu.memory_space<vmem>>, %arg6: memref<32x16xf32, #tpu.memory_space<vmem>>, %arg7: memref<8x32xf32, #tpu.memory_space<vmem>>, %arg8: memref<8x32xf32, #tpu.memory_space<vmem>>, %arg9: memref<8x32xf32, #tpu.memory_space<vmem>>) attributes {dimension_semantics = [#tpu.dimension_semantics<parallel>, #tpu.dimension_semantics<arbitrary>], iteration_bounds = array<i64: 1, 1>, scalar_prefetch = 0 : i64, scratch_operands = 2 : i64, tpu.core_type = #tpu.core_type<tc>, window_params = [{transform_indices = @transform_0, window_bounds = array<i64: 8, 32, 64>}, {pipeline_mode = #tpu.pipeline_mode<synchronous>, transform_indices = @transform_1, window_bounds = array<i64: 16, 32>}, {pipeline_mode = #tpu.pipeline_mode<synchronous>, transform_indices = @transform_2, window_bounds = array<i64: 32, 16>}, {pipeline_mode = #tpu.pipeline_mode<synchronous>, transform_indices = @transform_3, window_bounds = array<i64: 16, 32>}, {pipeline_mode = #tpu.pipeline_mode<synchronous>, transform_indices = @transform_4, window_bounds = array<i64: 32, 16>}, {transform_indices = @transform_5, window_bounds = array<i64: 8, 32>}]} {
    %c0_i32 = arith.constant 0 : i32
    %0 = arith.cmpi eq, %arg1, %c0_i32 : i32
    %1 = arith.extui %0 : i1 to i32
    %c0_i32_0 = arith.constant 0 : i32
    %2 = arith.cmpi ne, %1, %c0_i32_0 : i32
    scf.if %2 {
      %cst_14 = arith.constant 0.000000e+00 : f32
      %15 = vector.broadcast %cst_14 : f32 to vector<8x32xf32>
      %c0_15 = arith.constant 0 : index
      %c0_16 = arith.constant 0 : index
      %16 = vector.load %arg8[%c0_15, %c0_16] : memref<8x32xf32, #tpu.memory_space<vmem>>, vector<8x32xf32>
      tpu.vector_store %arg8[%c0_15, %c0_16], %15 {strides = array<i32>} : memref<8x32xf32, #tpu.memory_space<vmem>>, vector<8x32xf32>,
      %cst_17 = arith.constant 0xFF800000 : f32
      %17 = vector.broadcast %cst_17 : f32 to vector<8x32xf32>
      %c0_18 = arith.constant 0 : index
      %c0_19 = arith.constant 0 : index
      %18 = vector.load %arg9[%c0_18, %c0_19] : memref<8x32xf32, #tpu.memory_space<vmem>>, vector<8x32xf32>
      tpu.vector_store %arg9[%c0_18, %c0_19], %17 {strides = array<i32>} : memref<8x32xf32, #tpu.memory_space<vmem>>, vector<8x32xf32>,
    } else {
    }
    %c0 = arith.constant 0 : index
    %c0_1 = arith.constant 0 : index
    %c0_2 = arith.constant 0 : index
    %3 = vector.load %arg2[%c0, %c0_1, %c0_2] : memref<8x32x64xf32, #tpu.memory_space<vmem>>, vector<8x32x64xf32>
    %c0_3 = arith.constant 0 : index
    %c0_4 = arith.constant 0 : index
    %4 = vector.load %arg8[%c0_3, %c0_4] : memref<8x32xf32, #tpu.memory_space<vmem>>, vector<8x32xf32>
    %cst = arith.constant dense<0.000000e+00> : vector<8x32xf32>
    %5 = vector.multi_reduction <add>, %3, %cst [2] : vector<8x32x64xf32> to vector<8x32xf32>
    %6 = arith.addf %4, %5 : vector<8x32xf32>
    %c0_5 = arith.constant 0 : index
    %c0_6 = arith.constant 0 : index
    %7 = vector.load %arg8[%c0_5, %c0_6] : memref<8x32xf32, #tpu.memory_space<vmem>>, vector<8x32xf32>
    tpu.vector_store %arg8[%c0_5, %c0_6], %6 {strides = array<i32>} : memref<8x32xf32, #tpu.memory_space<vmem>>, vector<8x32xf32>,
    %c0_7 = arith.constant 0 : index
    %c0_8 = arith.constant 0 : index
    %8 = vector.load %arg9[%c0_7, %c0_8] : memref<8x32xf32, #tpu.memory_space<vmem>>, vector<8x32xf32>
    %cst_9 = arith.constant dense<0xFF800000> : vector<8x32xf32>
    %9 = vector.multi_reduction <maximumf>, %3, %cst_9 [2] : vector<8x32x64xf32> to vector<8x32xf32>
    %10 = arith.maximumf %8, %9 : vector<8x32xf32>
    %c0_10 = arith.constant 0 : index
    %c0_11 = arith.constant 0 : index
    %11 = vector.load %arg9[%c0_10, %c0_11] : memref<8x32xf32, #tpu.memory_space<vmem>>, vector<8x32xf32>
    tpu.vector_store %arg9[%c0_10, %c0_11], %10 {strides = array<i32>} : memref<8x32xf32, #tpu.memory_space<vmem>>, vector<8x32xf32>,
    %c0_i32_12 = arith.constant 0 : i32
    %12 = arith.cmpi eq, %arg1, %c0_i32_12 : i32
    %13 = arith.extui %12 : i1 to i32
    %c0_i32_13 = arith.constant 0 : i32
    %14 = arith.cmpi ne, %13, %c0_i32_13 : i32
    scf.if %14 {
      %c0_14 = arith.constant 0 : index
      %c0_15 = arith.constant 0 : index
      %15 = vector.load %arg8[%c0_14, %c0_15] : memref<8x32xf32, #tpu.memory_space<vmem>>, vector<8x32xf32>
      %cst_16 = arith.constant 1.562500e-02 : f32
      %16 = vector.broadcast %cst_16 : f32 to vector<8x32xf32>
      %17 = arith.mulf %15, %16 : vector<8x32xf32>
      %c0_17 = arith.constant 0 : index
      %c0_18 = arith.constant 0 : index
      %18 = vector.load %arg9[%c0_17, %c0_18] : memref<8x32xf32, #tpu.memory_space<vmem>>, vector<8x32xf32>
      %c0_19 = arith.constant 0 : index
      %c0_20 = arith.constant 0 : index
      %19 = vector.load %arg3[%c0_19, %c0_20] : memref<16x32xf32, #tpu.memory_space<vmem>>, vector<16x32xf32>
      %cst_21 = arith.constant dense<0.000000e+00> : vector<8x16xf32>
      %20 = tpu.matmul %17, %19, %cst_21 {dimension_numbers = #tpu.dot_dimension_numbers<[1], [1], [0], [0], [0, 0, 1, 0], [], []>} : vector<8x32xf32>, vector<16x32xf32>, vector<8x16xf32> -> vector<8x16xf32>
      %cst_22 = arith.constant 0.000000e+00 : f32
      %21 = vector.broadcast %cst_22 : f32 to vector<8x16xf32>
      %22 = arith.maximumf %20, %21 : vector<8x16xf32>
      %c0_23 = arith.constant 0 : index
      %c0_24 = arith.constant 0 : index
      %23 = vector.load %arg4[%c0_23, %c0_24] : memref<32x16xf32, #tpu.memory_space<vmem>>, vector<32x16xf32>
      %cst_25 = arith.constant dense<0.000000e+00> : vector<8x32xf32>
      %24 = tpu.matmul %22, %23, %cst_25 {dimension_numbers = #tpu.dot_dimension_numbers<[1], [1], [0], [0], [0, 0, 1, 0], [], []>} : vector<8x16xf32>, vector<32x16xf32>, vector<8x32xf32> -> vector<8x32xf32>
      %c0_26 = arith.constant 0 : index
      %c0_27 = arith.constant 0 : index
      %25 = vector.load %arg5[%c0_26, %c0_27] : memref<16x32xf32, #tpu.memory_space<vmem>>, vector<16x32xf32>
      %cst_28 = arith.constant dense<0.000000e+00> : vector<8x16xf32>
      %26 = tpu.matmul %18, %25, %cst_28 {dimension_numbers = #tpu.dot_dimension_numbers<[1], [1], [0], [0], [0, 0, 1, 0], [], []>} : vector<8x32xf32>, vector<16x32xf32>, vector<8x16xf32> -> vector<8x16xf32>
      %cst_29 = arith.constant 0.000000e+00 : f32
      %27 = vector.broadcast %cst_29 : f32 to vector<8x16xf32>
      %28 = arith.maximumf %26, %27 : vector<8x16xf32>
      %c0_30 = arith.constant 0 : index
      %c0_31 = arith.constant 0 : index
      %29 = vector.load %arg6[%c0_30, %c0_31] : memref<32x16xf32, #tpu.memory_space<vmem>>, vector<32x16xf32>
      %cst_32 = arith.constant dense<0.000000e+00> : vector<8x32xf32>
      %30 = tpu.matmul %28, %29, %cst_32 {dimension_numbers = #tpu.dot_dimension_numbers<[1], [1], [0], [0], [0, 0, 1, 0], [], []>} : vector<8x16xf32>, vector<32x16xf32>, vector<8x32xf32> -> vector<8x32xf32>
      %31 = arith.addf %24, %30 : vector<8x32xf32>
      %32 = arith.negf %31 : vector<8x32xf32>
      %33 = math.exp %32 : vector<8x32xf32>
      %cst_33 = arith.constant 1.000000e+00 : f32
      %34 = vector.broadcast %cst_33 : f32 to vector<8x32xf32>
      %35 = arith.addf %34, %33 : vector<8x32xf32>
      %36 = arith.divf %34, %35 : vector<8x32xf32>
      %c0_34 = arith.constant 0 : index
      %c0_35 = arith.constant 0 : index
      %37 = vector.load %arg7[%c0_34, %c0_35] : memref<8x32xf32, #tpu.memory_space<vmem>>, vector<8x32xf32>
      tpu.vector_store %arg7[%c0_34, %c0_35], %36 {strides = array<i32>} : memref<8x32xf32, #tpu.memory_space<vmem>>, vector<8x32xf32>,
    } else {
    }
    return
  }
  func.func @transform_0(%arg0: i32, %arg1: i32) -> (i32, i32, i32) {
    %c0_i32 = arith.constant 0 : i32
    %c0_i32_0 = arith.constant 0 : i32
    return %arg0, %c0_i32, %arg1 : i32, i32, i32
  }
  func.func @transform_1(%arg0: i32, %arg1: i32) -> (i32, i32) {
    %c0_i32 = arith.constant 0 : i32
    %c0_i32_0 = arith.constant 0 : i32
    %c0_i32_1 = arith.constant 0 : i32
    return %c0_i32, %c0_i32_0 : i32, i32
  }
  func.func @transform_2(%arg0: i32, %arg1: i32) -> (i32, i32) {
    %c0_i32 = arith.constant 0 : i32
    %c0_i32_0 = arith.constant 0 : i32
    %c0_i32_1 = arith.constant 0 : i32
    return %c0_i32, %c0_i32_0 : i32, i32
  }
  func.func @transform_3(%arg0: i32, %arg1: i32) -> (i32, i32) {
    %c0_i32 = arith.constant 0 : i32
    %c0_i32_0 = arith.constant 0 : i32
    %c0_i32_1 = arith.constant 0 : i32
    return %c0_i32, %c0_i32_0 : i32, i32
  }
  func.func @transform_4(%arg0: i32, %arg1: i32) -> (i32, i32) {
    %c0_i32 = arith.constant 0 : i32
    %c0_i32_0 = arith.constant 0 : i32
    %c0_i32_1 = arith.constant 0 : i32
    return %c0_i32, %c0_i32_0 : i32, i32
  }
  func.func @transform_5(%arg0: i32, %arg1: i32) -> (i32, i32) {
    %c0_i32 = arith.constant 0 : i32
    %c0_i32_0 = arith.constant 0 : i32
    return %arg0, %c0_i32 : i32, i32
  }
}

</mosaic_0001>

<llo_original>
// kernel: tpu_custom_call.1
$region0: #{tpu_custom_call.1}
  #allocation0 [shape = 'u32[]', space=smem, size = 0x4, offset = 0x4, fixed_abs, tag = 'smem constant byte address 0x4 - core index']
  #allocation1 [shape = 'u32[72,128]{1,0:T(1,128)}', space=vmem, size = 0x9000, scoped, tag = 'internal scratch']
  #allocation2 [shape = 'f32[8,32]{1,0:T(8,128)}', space=vmem, size = 0x1000, scoped, tag = 'scratch operand']
  #allocation3 [shape = 'f32[8,32]{1,0:T(8,128)}', space=vmem, size = 0x1000, scoped, tag = 'scratch operand']
  %s0 = inlined_call_operand.hbm [shape: f32[8,32,64], index: 0, kind: input, shape index: {}]
  %s1 = inlined_call_operand.vmem [shape: f32[16,32], index: 1, kind: input, shape index: {}]
  %s2 = inlined_call_operand.vmem [shape: f32[32,16], index: 2, kind: input, shape index: {}]
  %s3 = inlined_call_operand.vmem [shape: f32[16,32], index: 3, kind: input, shape index: {}]
  %s4 = inlined_call_operand.vmem [shape: f32[32,16], index: 4, kind: input, shape index: {}]
  %s5 = inlined_call_operand.hbm [shape: f32[8,32], index: 5, kind: output, shape index: {}]
  %s6 = sld [smem:[#allocation0]]
  $region42: #{tpu_custom_call.1} parent=0
    _
  %s8 = ssub.s32 1, %s6
  %s9 = scalar_select 0, %s8, %s6
  $region1: #{tpu_custom_call.1} parent=0
    #allocation4 [shape = 'u8[131072]{0}', space=vmem, size = 0x20000, scoped, tag = 'input window, operand 0, single buffered']
    #allocation5 [shape = 's32[1]{0}', space=sflag, size = 0x4, scoped, tag = 'scoped memory for tpu_custom_call.1']
    #allocation6 [shape = 's32[1]{0}', space=sflag, size = 0x4, scoped, tag = 'scoped memory for tpu_custom_call.1']
    #allocation7 [shape = 'u8[4096]{0}', space=vmem, size = 0x1000, scoped, tag = 'output window, operand 0, single buffered']
    %10 = vsyncpa [#allocation5], 0
    %11 = vsyncpa [#allocation6], 0
    // Predicated region
    $region2: #{tpu_custom_call.1} parent=1 // pred_check
      _
    $region3: #{tpu_custom_call.1} parent=1 // pred_check_branch
      %13 = sbr.rel (0) target = $region5
    $region4: #{tpu_custom_call.1} parent=1 // pred_region
      %15 = vsyncadd [#allocation5], 0
      %s16 = sshll.u32 %s0, 4
      %s17 = int_to_ptr.hbm [resolvable:$true] %s16
      %s18 = sshll.u32 [#allocation4], 4
      %s19 = int_to_ptr.vmem [resolvable:$true] %s18
      %24 = dma.hbm_to_vmem [thread:$0]  %s17, 4096, %s19, [#allocation5], 128, 128, 8
    $region5: #{tpu_custom_call.1} parent=1 // pred_fallthru
      _
    // Predicated region
    $region6: #{tpu_custom_call.1} parent=1 // pred_check
      _
    $region7: #{tpu_custom_call.1} parent=1 // pred_check_branch
      %26 = sbr.rel (0) target = $region9
    $region8: #{tpu_custom_call.1} parent=1 // pred_region
      _
    $region9: #{tpu_custom_call.1} parent=1 // pred_fallthru
      _
    // Predicated region
    $region10: #{tpu_custom_call.1} parent=1 // pred_check
      _
    $region11: #{tpu_custom_call.1} parent=1 // pred_check_branch
      %28 = sbr.rel (0) target = $region13
    $region12: #{tpu_custom_call.1} parent=1 // pred_region
      _
    $region13: #{tpu_custom_call.1} parent=1 // pred_fallthru
      _
    // Predicated region
    $region14: #{tpu_custom_call.1} parent=1 // pred_check
      _
    $region15: #{tpu_custom_call.1} parent=1 // pred_check_branch
      %30 = sbr.rel (0) target = $region17
    $region16: #{tpu_custom_call.1} parent=1 // pred_region
      _
    $region17: #{tpu_custom_call.1} parent=1 // pred_fallthru
      _
    // Predicated region
    $region18: #{tpu_custom_call.1} parent=1 // pred_check
      _
    $region19: #{tpu_custom_call.1} parent=1 // pred_check_branch
      %32 = sbr.rel (0) target = $region21
    $region20: #{tpu_custom_call.1} parent=1 // pred_region
      _
    $region21: #{tpu_custom_call.1} parent=1 // pred_fallthru
      _
    // Predicated region
    $region22: #{tpu_custom_call.1} parent=1 // pred_check
      _
    $region23: #{tpu_custom_call.1} parent=1 // pred_check_branch
      %34 = sbr.rel (0) target = $region25
    $region24: #{tpu_custom_call.1} parent=1 // pred_region
      %36 = dma.done [#allocation5], 4096
    $region25: #{tpu_custom_call.1} parent=1 // pred_fallthru
      _
    %p37 = scmp.eq.s32.totalorder 0, 0
    // Predicated region
    $region26: #{tpu_custom_call.1} parent=1 // pred_check
      %p38 = pneg %p37
    $region27: #{tpu_custom_call.1} parent=1 // pred_check_branch
      %40 = sbr.rel (%p38) target = $region29
    $region28: #{tpu_custom_call.1} parent=1 // pred_region
      %vm41 = vcmask 261120
      %42 = vst.msk [vmem:[#allocation2] sm:$0xff] %vm41, 0.0
      %43 = vst.msk [vmem:[#allocation3] sm:$0xff] %vm41, -inf
    $region29: #{tpu_custom_call.1} parent=1 // pred_fallthru
      _
    %v44 = vld [vmem:[#allocation4] sm:$0xff]
    %v45 = vld [vmem:[#allocation4 + $0x8] sm:$0xff]
    %v46 = vld [vmem:[#allocation4 + $0x10] sm:$0xff]
    %v47 = vld [vmem:[#allocation4 + $0x18] sm:$0xff]
    %v48 = vld [vmem:[#allocation4 + $0x20] sm:$0xff]
    %v49 = vld [vmem:[#allocation4 + $0x28] sm:$0xff]
    %v50 = vld [vmem:[#allocation4 + $0x30] sm:$0xff]
    %v51 = vld [vmem:[#allocation4 + $0x38] sm:$0xff]
    %v52 = vld [vmem:[#allocation4 + $0x40] sm:$0xff]
    %v53 = vld [vmem:[#allocation4 + $0x48] sm:$0xff]
    %v54 = vld [vmem:[#allocation4 + $0x50] sm:$0xff]
    %v55 = vld [vmem:[#allocation4 + $0x58] sm:$0xff]
    %v56 = vld [vmem:[#allocation4 + $0x60] sm:$0xff]
    %v57 = vld [vmem:[#allocation4 + $0x68] sm:$0xff]
    %v58 = vld [vmem:[#allocation4 + $0x70] sm:$0xff]
    %v59 = vld [vmem:[#allocation4 + $0x78] sm:$0xff]
    %v60 = vld [vmem:[#allocation4 + $0x80] sm:$0xff]
    %v61 = vld [vmem:[#allocation4 + $0x88] sm:$0xff]
    %v62 = vld [vmem:[#allocation4 + $0x90] sm:$0xff]
    %v63 = vld [vmem:[#allocation4 + $0x98] sm:$0xff]
    %v64 = vld [vmem:[#allocation4 + $0xa0] sm:$0xff]
    %v65 = vld [vmem:[#allocation4 + $0xa8] sm:$0xff]
    %v66 = vld [vmem:[#allocation4 + $0xb0] sm:$0xff]
    %v67 = vld [vmem:[#allocation4 + $0xb8] sm:$0xff]
    %v68 = vld [vmem:[#allocation4 + $0xc0] sm:$0xff]
    %v69 = vld [vmem:[#allocation4 + $0xc8] sm:$0xff]
    %v70 = vld [vmem:[#allocation4 + $0xd0] sm:$0xff]
    %v71 = vld [vmem:[#allocation4 + $0xd8] sm:$0xff]
    %v72 = vld [vmem:[#allocation4 + $0xe0] sm:$0xff]
    %v73 = vld [vmem:[#allocation4 + $0xe8] sm:$0xff]
    %v74 = vld [vmem:[#allocation4 + $0xf0] sm:$0xff]
    %v75 = vld [vmem:[#allocation4 + $0xf8] sm:$0xff]
    %v76 = vld [vmem:[#allocation2] sm:$0xff]
    %vm77 = vcmask 523264
    %v78 = vsel %vm77, %v44, 0.0
    %79 = vadd.xlane.f32.xlu0 %v78
    %v80 = vpop.xlane.xlu0 %79
    %v81 = vsel %vm77, %v45, 0.0
    %82 = vadd.xlane.f32.xlu0 %v81
    %v83 = vpop.xlane.xlu0 %82
    %v84 = vsel %vm77, %v46, 0.0
    %85 = vadd.xlane.f32.xlu0 %v84
    %v86 = vpop.xlane.xlu0 %85
    %v87 = vsel %vm77, %v47, 0.0
    %88 = vadd.xlane.f32.xlu0 %v87
    %v89 = vpop.xlane.xlu0 %88
    %v90 = vsel %vm77, %v48, 0.0
    %91 = vadd.xlane.f32.xlu0 %v90
    %v92 = vpop.xlane.xlu0 %91
    %v93 = vsel %vm77, %v49, 0.0
    %94 = vadd.xlane.f32.xlu0 %v93
    %v95 = vpop.xlane.xlu0 %94
    %v96 = vsel %vm77, %v50, 0.0
    %97 = vadd.xlane.f32.xlu0 %v96
    %v98 = vpop.xlane.xlu0 %97
    %v99 = vsel %vm77, %v51, 0.0
    %100 = vadd.xlane.f32.xlu0 %v99
    %v101 = vpop.xlane.xlu0 %100
    %v102 = vsel %vm77, %v52, 0.0
    %103 = vadd.xlane.f32.xlu0 %v102
    %v104 = vpop.xlane.xlu0 %103
    %v105 = vsel %vm77, %v53, 0.0
    %106 = vadd.xlane.f32.xlu0 %v105
    %v107 = vpop.xlane.xlu0 %106
    %v108 = vsel %vm77, %v54, 0.0
    %109 = vadd.xlane.f32.xlu0 %v108
    %v110 = vpop.xlane.xlu0 %109
    %v111 = vsel %vm77, %v55, 0.0
    %112 = vadd.xlane.f32.xlu0 %v111
    %v113 = vpop.xlane.xlu0 %112
    %v114 = vsel %vm77, %v56, 0.0
    %115 = vadd.xlane.f32.xlu0 %v114
    %v116 = vpop.xlane.xlu0 %115
    %v117 = vsel %vm77, %v57, 0.0
    %118 = vadd.xlane.f32.xlu0 %v117
    %v119 = vpop.xlane.xlu0 %118
    %v120 = vsel %vm77, %v58, 0.0
    %121 = vadd.xlane.f32.xlu0 %v120
    %v122 = vpop.xlane.xlu0 %121
    %v123 = vsel %vm77, %v59, 0.0
    %124 = vadd.xlane.f32.xlu0 %v123
    %v125 = vpop.xlane.xlu0 %124
    %v126 = vsel %vm77, %v60, 0.0
    %127 = vadd.xlane.f32.xlu0 %v126
    %v128 = vpop.xlane.xlu0 %127
    %v129 = vsel %vm77, %v61, 0.0
    %130 = vadd.xlane.f32.xlu0 %v129
    %v131 = vpop.xlane.xlu0 %130
    %v132 = vsel %vm77, %v62, 0.0
    %133 = vadd.xlane.f32.xlu0 %v132
    %v134 = vpop.xlane.xlu0 %133
    %v135 = vsel %vm77, %v63, 0.0
    %136 = vadd.xlane.f32.xlu0 %v135
    %v137 = vpop.xlane.xlu0 %136
    %v138 = vsel %vm77, %v64, 0.0
    %139 = vadd.xlane.f32.xlu0 %v138
    %v140 = vpop.xlane.xlu0 %139
    %v141 = vsel %vm77, %v65, 0.0
    %142 = vadd.xlane.f32.xlu0 %v141
    %v143 = vpop.xlane.xlu0 %142
    %v144 = vsel %vm77, %v66, 0.0
    %145 = vadd.xlane.f32.xlu0 %v144
    %v146 = vpop.xlane.xlu0 %145
    %v147 = vsel %vm77, %v67, 0.0
    %148 = vadd.xlane.f32.xlu0 %v147
    %v149 = vpop.xlane.xlu0 %148
    %v150 = vsel %vm77, %v68, 0.0
    %151 = vadd.xlane.f32.xlu0 %v150
    %v152 = vpop.xlane.xlu0 %151
    %v153 = vsel %vm77, %v69, 0.0
    %154 = vadd.xlane.f32.xlu0 %v153
    %v155 = vpop.xlane.xlu0 %154
    %v156 = vsel %vm77, %v70, 0.0
    %157 = vadd.xlane.f32.xlu0 %v156
    %v158 = vpop.xlane.xlu0 %157
    %v159 = vsel %vm77, %v71, 0.0
    %160 = vadd.xlane.f32.xlu0 %v159
    %v161 = vpop.xlane.xlu0 %160
    %v162 = vsel %vm77, %v72, 0.0
    %163 = vadd.xlane.f32.xlu0 %v162
    %v164 = vpop.xlane.xlu0 %163
    %v165 = vsel %vm77, %v73, 0.0
    %166 = vadd.xlane.f32.xlu0 %v165
    %v167 = vpop.xlane.xlu0 %166
    %v168 = vsel %vm77, %v74, 0.0
    %169 = vadd.xlane.f32.xlu0 %v168
    %v170 = vpop.xlane.xlu0 %169
    %v171 = vsel %vm77, %v75, 0.0
    %172 = vadd.xlane.f32.xlu0 %v171
    %v173 = vpop.xlane.xlu0 %172
    %v206 = vlaneseq
    %v207 = vand.u32 %v206, 127
    %v208 = vperm.slane %v80, %v207
    %v209 = vadd.s32 %v207, 4294967288
    %v210 = vperm.slane %v83, %v209
    %vm211 = vcmask 130112
    %v212 = vsel %vm211, %v210, %v208
    %v213 = vadd.s32 %v207, 4294967280
    %v214 = vperm.slane %v86, %v213
    %vm215 = vcmask 195712
    %v216 = vsel %vm215, %v214, %v212
    %v217 = vadd.s32 %v207, 4294967272
    %v218 = vperm.slane %v89, %v217
    %vm219 = vcmask 261312
    %v220 = vsel %vm219, %v218, %v216
    %v221 = vperm.slane %v92, %v207
    %v222 = vperm.slane %v95, %v209
    %v223 = vsel %vm211, %v222, %v221
    %v224 = vperm.slane %v98, %v213
    %v225 = vsel %vm215, %v224, %v223
    %v226 = vperm.slane %v101, %v217
    %v227 = vsel %vm219, %v226, %v225
    %v228 = vperm.slane %v104, %v207
    %v229 = vperm.slane %v107, %v209
    %v230 = vsel %vm211, %v229, %v228
    %v231 = vperm.slane %v110, %v213
    %v232 = vsel %vm215, %v231, %v230
    %v233 = vperm.slane %v113, %v217
    %v234 = vsel %vm219, %v233, %v232
    %v235 = vperm.slane %v116, %v207
    %v236 = vperm.slane %v119, %v209
    %v237 = vsel %vm211, %v236, %v235
    %v238 = vperm.slane %v122, %v213
    %v239 = vsel %vm215, %v238, %v237
    %v240 = vperm.slane %v125, %v217
    %v241 = vsel %vm219, %v240, %v239
    %v242 = vperm.slane %v128, %v207
    %v243 = vperm.slane %v131, %v209
    %v244 = vsel %vm211, %v243, %v242
    %v245 = vperm.slane %v134, %v213
    %v246 = vsel %vm215, %v245, %v244
    %v247 = vperm.slane %v137, %v217
    %v248 = vsel %vm219, %v247, %v246
    %v249 = vperm.slane %v140, %v207
    %v250 = vperm.slane %v143, %v209
    %v251 = vsel %vm211, %v250, %v249
    %v252 = vperm.slane %v146, %v213
    %v253 = vsel %vm215, %v252, %v251
    %v254 = vperm.slane %v149, %v217
    %v255 = vsel %vm219, %v254, %v253
    %v256 = vperm.slane %v152, %v207
    %v257 = vperm.slane %v155, %v209
    %v258 = vsel %vm211, %v257, %v256
    %v259 = vperm.slane %v158, %v213
    %v260 = vsel %vm215, %v259, %v258
    %v261 = vperm.slane %v161, %v217
    %v262 = vsel %vm219, %v261, %v260
    %v263 = vperm.slane %v164, %v207
    %v264 = vperm.slane %v167, %v209
    %v265 = vsel %vm211, %v264, %v263
    %v266 = vperm.slane %v170, %v213
    %v267 = vsel %vm215, %v266, %v265
    %v268 = vperm.slane %v173, %v217
    %v269 = vsel %vm219, %v268, %v267
    %vm270 = vcmask 1041409
    %v271 = vsel %vm270, %v227, %v220
    %vm272 = vcmask 1042434
    %v273 = vsel %vm272, %v234, %v271
    %vm274 = vcmask 1043459
    %v275 = vsel %vm274, %v241, %v273
    %vm276 = vcmask 1044484
    %v277 = vsel %vm276, %v248, %v275
    %vm278 = vcmask 1045509
    %v279 = vsel %vm278, %v255, %v277
    %vm280 = vcmask 1046534
    %v281 = vsel %vm280, %v262, %v279
    %vm282 = vcmask 1047559
    %v283 = vsel %vm282, %v269, %v281
    %v285 = vadd.f32 %v76, %v283
    %vm286 = vcmask 261120
    %287 = vst.msk [vmem:[#allocation2] sm:$0xff] %vm286, %v285
    %v288 = vld [vmem:[#allocation3] sm:$0xff]
    %v289 = vsel %vm77, %v44, -inf
    %290 = vmax.xlane.f32.xlu0 %v289
    %v291 = vpop.xlane.xlu0 %290
    %v292 = vsel %vm77, %v45, -inf
    %293 = vmax.xlane.f32.xlu0 %v292
    %v294 = vpop.xlane.xlu0 %293
    %v295 = vsel %vm77, %v46, -inf
    %296 = vmax.xlane.f32.xlu0 %v295
    %v297 = vpop.xlane.xlu0 %296
    %v298 = vsel %vm77, %v47, -inf
    %299 = vmax.xlane.f32.xlu0 %v298
    %v300 = vpop.xlane.xlu0 %299
    %v301 = vsel %vm77, %v48, -inf
    %302 = vmax.xlane.f32.xlu0 %v301
    %v303 = vpop.xlane.xlu0 %302
    %v304 = vsel %vm77, %v49, -inf
    %305 = vmax.xlane.f32.xlu0 %v304
    %v306 = vpop.xlane.xlu0 %305
    %v307 = vsel %vm77, %v50, -inf
    %308 = vmax.xlane.f32.xlu0 %v307
    %v309 = vpop.xlane.xlu0 %308
    %v310 = vsel %vm77, %v51, -inf
    %311 = vmax.xlane.f32.xlu0 %v310
    %v312 = vpop.xlane.xlu0 %311
    %v313 = vsel %vm77, %v52, -inf
    %314 = vmax.xlane.f32.xlu0 %v313
    %v315 = vpop.xlane.xlu0 %314
    %v316 = vsel %vm77, %v53, -inf
    %317 = vmax.xlane.f32.xlu0 %v316
    %v318 = vpop.xlane.xlu0 %317
    %v319 = vsel %vm77, %v54, -inf
    %320 = vmax.xlane.f32.xlu0 %v319
    %v321 = vpop.xlane.xlu0 %320
    %v322 = vsel %vm77, %v55, -inf
    %323 = vmax.xlane.f32.xlu0 %v322
    %v324 = vpop.xlane.xlu0 %323
    %v325 = vsel %vm77, %v56, -inf
    %326 = vmax.xlane.f32.xlu0 %v325
    %v327 = vpop.xlane.xlu0 %326
    %v328 = vsel %vm77, %v57, -inf
    %329 = vmax.xlane.f32.xlu0 %v328
    %v330 = vpop.xlane.xlu0 %329
    %v331 = vsel %vm77, %v58, -inf
    %332 = vmax.xlane.f32.xlu0 %v331
    %v333 = vpop.xlane.xlu0 %332
    %v334 = vsel %vm77, %v59, -inf
    %335 = vmax.xlane.f32.xlu0 %v334
    %v336 = vpop.xlane.xlu0 %335
    %v337 = vsel %vm77, %v60, -inf
    %338 = vmax.xlane.f32.xlu0 %v337
    %v339 = vpop.xlane.xlu0 %338
    %v340 = vsel %vm77, %v61, -inf
    %341 = vmax.xlane.f32.xlu0 %v340
    %v342 = vpop.xlane.xlu0 %341
    %v343 = vsel %vm77, %v62, -inf
    %344 = vmax.xlane.f32.xlu0 %v343
    %v345 = vpop.xlane.xlu0 %344
    %v346 = vsel %vm77, %v63, -inf
    %347 = vmax.xlane.f32.xlu0 %v346
    %v348 = vpop.xlane.xlu0 %347
    %v349 = vsel %vm77, %v64, -inf
    %350 = vmax.xlane.f32.xlu0 %v349
    %v351 = vpop.xlane.xlu0 %350
    %v352 = vsel %vm77, %v65, -inf
    %353 = vmax.xlane.f32.xlu0 %v352
    %v354 = vpop.xlane.xlu0 %353
    %v355 = vsel %vm77, %v66, -inf
    %356 = vmax.xlane.f32.xlu0 %v355
    %v357 = vpop.xlane.xlu0 %356
    %v358 = vsel %vm77, %v67, -inf
    %359 = vmax.xlane.f32.xlu0 %v358
    %v360 = vpop.xlane.xlu0 %359
    %v361 = vsel %vm77, %v68, -inf
    %362 = vmax.xlane.f32.xlu0 %v361
    %v363 = vpop.xlane.xlu0 %362
    %v364 = vsel %vm77, %v69, -inf
    %365 = vmax.xlane.f32.xlu0 %v364
    %v366 = vpop.xlane.xlu0 %365
    %v367 = vsel %vm77, %v70, -inf
    %368 = vmax.xlane.f32.xlu0 %v367
    %v369 = vpop.xlane.xlu0 %368
    %v370 = vsel %vm77, %v71, -inf
    %371 = vmax.xlane.f32.xlu0 %v370
    %v372 = vpop.xlane.xlu0 %371
    %v373 = vsel %vm77, %v72, -inf
    %374 = vmax.xlane.f32.xlu0 %v373
    %v375 = vpop.xlane.xlu0 %374
    %v376 = vsel %vm77, %v73, -inf
    %377 = vmax.xlane.f32.xlu0 %v376
    %v378 = vpop.xlane.xlu0 %377
    %v379 = vsel %vm77, %v74, -inf
    %380 = vmax.xlane.f32.xlu0 %v379
    %v381 = vpop.xlane.xlu0 %380
    %v382 = vsel %vm77, %v75, -inf
    %383 = vmax.xlane.f32.xlu0 %v382
    %v384 = vpop.xlane.xlu0 %383
    %v417 = vperm.slane %v291, %v207
    %v418 = vperm.slane %v294, %v209
    %v419 = vsel %vm211, %v418, %v417
    %v420 = vperm.slane %v297, %v213
    %v421 = vsel %vm215, %v420, %v419
    %v422 = vperm.slane %v300, %v217
    %v423 = vsel %vm219, %v422, %v421
    %v424 = vperm.slane %v303, %v207
    %v425 = vperm.slane %v306, %v209
    %v426 = vsel %vm211, %v425, %v424
    %v427 = vperm.slane %v309, %v213
    %v428 = vsel %vm215, %v427, %v426
    %v429 = vperm.slane %v312, %v217
    %v430 = vsel %vm219, %v429, %v428
    %v431 = vperm.slane %v315, %v207
    %v432 = vperm.slane %v318, %v209
    %v433 = vsel %vm211, %v432, %v431
    %v434 = vperm.slane %v321, %v213
    %v435 = vsel %vm215, %v434, %v433
    %v436 = vperm.slane %v324, %v217
    %v437 = vsel %vm219, %v436, %v435
    %v438 = vperm.slane %v327, %v207
    %v439 = vperm.slane %v330, %v209
    %v440 = vsel %vm211, %v439, %v438
    %v441 = vperm.slane %v333, %v213
    %v442 = vsel %vm215, %v441, %v440
    %v443 = vperm.slane %v336, %v217
    %v444 = vsel %vm219, %v443, %v442
    %v445 = vperm.slane %v339, %v207
    %v446 = vperm.slane %v342, %v209
    %v447 = vsel %vm211, %v446, %v445
    %v448 = vperm.slane %v345, %v213
    %v449 = vsel %vm215, %v448, %v447
    %v450 = vperm.slane %v348, %v217
    %v451 = vsel %vm219, %v450, %v449
    %v452 = vperm.slane %v351, %v207
    %v453 = vperm.slane %v354, %v209
    %v454 = vsel %vm211, %v453, %v452
    %v455 = vperm.slane %v357, %v213
    %v456 = vsel %vm215, %v455, %v454
    %v457 = vperm.slane %v360, %v217
    %v458 = vsel %vm219, %v457, %v456
    %v459 = vperm.slane %v363, %v207
    %v460 = vperm.slane %v366, %v209
    %v461 = vsel %vm211, %v460, %v459
    %v462 = vperm.slane %v369, %v213
    %v463 = vsel %vm215, %v462, %v461
    %v464 = vperm.slane %v372, %v217
    %v465 = vsel %vm219, %v464, %v463
    %v466 = vperm.slane %v375, %v207
    %v467 = vperm.slane %v378, %v209
    %v468 = vsel %vm211, %v467, %v466
    %v469 = vperm.slane %v381, %v213
    %v470 = vsel %vm215, %v469, %v468
    %v471 = vperm.slane %v384, %v217
    %v472 = vsel %vm219, %v471, %v470
    %v473 = vsel %vm270, %v430, %v423
    %v474 = vsel %vm272, %v437, %v473
    %v475 = vsel %vm274, %v444, %v474
    %v476 = vsel %vm276, %v451, %v475
    %v477 = vsel %vm278, %v458, %v476
    %v478 = vsel %vm280, %v465, %v477
    %v479 = vsel %vm282, %v472, %v478
    %v481 = vmax.f32 %v288, %v479
    %482 = vst.msk [vmem:[#allocation3] sm:$0xff] %vm286, %v481
    // Predicated region
    $region30: #{tpu_custom_call.1} parent=1 // pred_check
      %p483 = pneg %p37
    $region31: #{tpu_custom_call.1} parent=1 // pred_check_branch
      %485 = sbr.rel (%p483) target = $region33
    $region32: #{tpu_custom_call.1} parent=1 // pred_region
      %v486 = vld [vmem:[#allocation2] sm:$0xff]
      %v487 = vmul.f32 %v486, 0.015625
      %v488 = vld [vmem:[#allocation3] sm:$0xff]
      %v489 = vld [vmem:[%s1] sm:$0xff]
      %v490 = vld [vmem:[%s1 + $0x8] sm:$0xff]
      %v492 = vsel %vm286, %v487, 0
      %v495 = vsel %vm286, %v489, 0
      %v498 = vsel %vm286, %v490, 0
      %500 = vmatpush.xpose.msra.mxu0 0.0
      %501 = vmatpush.xpose.msra.mxu0 0.0
      %502 = vmatpush.xpose.msra.mxu0 0.0
      %503 = vmatpush.xpose.msra.mxu0 0.0
      %504 = vmatpush.xpose.msra.mxu0 0.0
      %505 = vmatpush.xpose.msra.mxu0 0.0
      %506 = vmatpush.xpose.msra.mxu0 0.0
      %507 = vmatpush.xpose.msra.mxu0 0.0
      %508 = vmatpush.xpose.msra.mxu0 0.0
      %509 = vmatpush.xpose.msra.mxu0 0.0
      %510 = vmatpush.xpose.msra.mxu0 0.0
      %511 = vmatpush.xpose.msra.mxu0 0.0
      %512 = vmatpush.xpose.msra.mxu0 0.0
      %513 = vmatpush.xpose.msra.mxu0 0.0
      %514 = vmatpush.xpose.msra.mxu0 %v498
      %515 = vmatpush.xpose.msra.mxu0 %v495
      %516 = vmatmul.f32.gmra.mxu0 %v492
      %v517 = vpop.f32.mrf.mxu0
      %v518 = vadd.f32 0.0, %v517
      %519 = vdwg.mxu0
      %v520 = vmax.f32 %v518, 0.0
      %v521 = vld [vmem:[%s2] sm:$0xff]
      %v522 = vld [vmem:[%s2 + $0x8] sm:$0xff]
      %v523 = vld [vmem:[%s2 + $0x10] sm:$0xff]
      %v524 = vld [vmem:[%s2 + $0x18] sm:$0xff]
      %v525 = vld [vmem:[%s3] sm:$0xff]
      %v526 = vld [vmem:[%s3 + $0x8] sm:$0xff]
      %v528 = vsel %vm286, %v488, 0
      %v531 = vsel %vm286, %v525, 0
      %v534 = vsel %vm286, %v526, 0
      %536 = vmatpush.xpose.msra.mxu0 0.0
      %537 = vmatpush.xpose.msra.mxu0 0.0
      %538 = vmatpush.xpose.msra.mxu0 0.0
      %539 = vmatpush.xpose.msra.mxu0 0.0
      %540 = vmatpush.xpose.msra.mxu0 0.0
      %541 = vmatpush.xpose.msra.mxu0 0.0
      %542 = vmatpush.xpose.msra.mxu0 0.0
      %543 = vmatpush.xpose.msra.mxu0 0.0
      %544 = vmatpush.xpose.msra.mxu0 0.0
      %545 = vmatpush.xpose.msra.mxu0 0.0
      %546 = vmatpush.xpose.msra.mxu0 0.0
      %547 = vmatpush.xpose.msra.mxu0 0.0
      %548 = vmatpush.xpose.msra.mxu0 0.0
      %549 = vmatpush.xpose.msra.mxu0 0.0
      %550 = vmatpush.xpose.msra.mxu0 %v534
      %551 = vmatpush.xpose.msra.mxu0 %v531
      %552 = vmatmul.f32.gmra.mxu0 %v528
      %v553 = vpop.f32.mrf.mxu0
      %v554 = vadd.f32 0.0, %v553
      %555 = vdwg.mxu0
      %v556 = vmax.f32 %v554, 0.0
      %v557 = vld [vmem:[%s4] sm:$0xff]
      %v558 = vld [vmem:[%s4 + $0x8] sm:$0xff]
      %v559 = vld [vmem:[%s4 + $0x10] sm:$0xff]
      %v560 = vld [vmem:[%s4 + $0x18] sm:$0xff]
      %vm561 = vcmask 130048
      %v563 = vsel %vm561, %v556, 0
      %v566 = vsel %vm561, %v557, 0
      %v569 = vsel %vm561, %v558, 0
      %v572 = vsel %vm561, %v559, 0
      %v575 = vsel %vm561, %v560, 0
      %577 = vmatpush.xpose.msra.mxu0 0.0
      %578 = vmatpush.xpose.msra.mxu0 0.0
      %579 = vmatpush.xpose.msra.mxu0 0.0
      %580 = vmatpush.xpose.msra.mxu0 0.0
      %581 = vmatpush.xpose.msra.mxu0 0.0
      %582 = vmatpush.xpose.msra.mxu0 0.0
      %583 = vmatpush.xpose.msra.mxu0 0.0
      %584 = vmatpush.xpose.msra.mxu0 0.0
      %585 = vmatpush.xpose.msra.mxu0 0.0
      %586 = vmatpush.xpose.msra.mxu0 0.0
      %587 = vmatpush.xpose.msra.mxu0 0.0
      %588 = vmatpush.xpose.msra.mxu0 0.0
      %589 = vmatpush.xpose.msra.mxu0 %v575
      %590 = vmatpush.xpose.msra.mxu0 %v572
      %591 = vmatpush.xpose.msra.mxu0 %v569
      %592 = vmatpush.xpose.msra.mxu0 %v566
      %593 = vmatmul.f32.gmra.mxu0 %v563
      %v594 = vpop.f32.mrf.mxu0
      %v595 = vadd.f32 0.0, %v594
      %596 = vdwg.mxu0
      %v598 = vsel %vm561, %v520, 0
      %v601 = vsel %vm561, %v521, 0
      %v604 = vsel %vm561, %v522, 0
      %v607 = vsel %vm561, %v523, 0
      %v610 = vsel %vm561, %v524, 0
      %612 = vmatpush.xpose.msra.mxu0 0.0
      %613 = vmatpush.xpose.msra.mxu0 0.0
      %614 = vmatpush.xpose.msra.mxu0 0.0
      %615 = vmatpush.xpose.msra.mxu0 0.0
      %616 = vmatpush.xpose.msra.mxu0 0.0
      %617 = vmatpush.xpose.msra.mxu0 0.0
      %618 = vmatpush.xpose.msra.mxu0 0.0
      %619 = vmatpush.xpose.msra.mxu0 0.0
      %620 = vmatpush.xpose.msra.mxu0 0.0
      %621 = vmatpush.xpose.msra.mxu0 0.0
      %622 = vmatpush.xpose.msra.mxu0 0.0
      %623 = vmatpush.xpose.msra.mxu0 0.0
      %624 = vmatpush.xpose.msra.mxu0 %v610
      %625 = vmatpush.xpose.msra.mxu0 %v607
      %626 = vmatpush.xpose.msra.mxu0 %v604
      %627 = vmatpush.xpose.msra.mxu0 %v601
      %628 = vmatmul.f32.gmra.mxu0 %v598
      %v629 = vpop.f32.mrf.mxu0
      %v630 = vadd.f32 %v595, %v629
      %631 = vdwg.mxu0
      %v632 = vxor.u32 %v630, 2147483648
      %v633 = vmul.f32 %v632, 1.442695
      %v634 = vpow.pop %v633
      %v635 = vadd.f32 %v634, 1.0
      %v636 = vrcp.pop %v635
      %v637 = vmul.f32 %v635, %v636
      %v638 = vsub.f32 1.0, %v637
      %v639 = vmul.f32 %v636, %v638
      %v640 = vadd.f32 %v636, %v639
      %vm641 = vweird.f32 %v635
      %vm642 = vweird.f32 %v636
      %vm643 = vmor %vm641, %vm642
      %v644 = vsel %vm643, %v636, %v640
      %v645 = vand.u32 2147483647, %v635
      %vm646 = vcmp.eq.f32.partialorder %v645, 8.507059e+37
      %v647 = vand.u32 %v635, 2147483648
      %v648 = vor.u32 1.1754944e-38, %v647
      %v649 = vsel %vm646, %v648, %v644
      %v650 = vmul.f32 1.0, %v649
      %651 = vst.msk [vmem:[#allocation7] sm:$0xff] %vm286, %v650
    $region33: #{tpu_custom_call.1} parent=1 // pred_fallthru
      _
    // Predicated region
    $region34: #{tpu_custom_call.1} parent=1 // pred_check
      _
    $region35: #{tpu_custom_call.1} parent=1 // pred_check_branch
      %653 = sbr.rel (0) target = $region37
    $region36: #{tpu_custom_call.1} parent=1 // pred_region
      %655 = vsyncadd [#allocation6], 0
      %s657 = sshll.u32 [#allocation7], 4
      %s658 = int_to_ptr.vmem [resolvable:$true] %s657
      %s659 = sshll.u32 %s5, 4
      %s660 = int_to_ptr.hbm [resolvable:$true] %s659
      %662 = dma.vmem_to_hbm [thread:$0]  %s658, 128, %s660, [#allocation6]
    $region37: #{tpu_custom_call.1} parent=1 // pred_fallthru
      _
    // Predicated region
    $region38: #{tpu_custom_call.1} parent=1 // pred_check
      _
    $region39: #{tpu_custom_call.1} parent=1 // pred_check_branch
      %664 = sbr.rel (0) target = $region41
    $region40: #{tpu_custom_call.1} parent=1 // pred_region
      %666 = dma.done [#allocation6], 128
    $region41: #{tpu_custom_call.1} parent=1 // pred_fallthru
      _
    %667 = vsyncpa [#allocation5], 1
    %668 = vsyncpa [#allocation6], 1

</llo_original>
